<compile_context>
chip_gen: v6e
topology: v6e:2x2x1
jax: 0.10.0
libtpu: 0.0.40
codegen_flags: <defaults>
</compile_context>

<pallas_src>
import jax
import jax.numpy as jnp
from jax.experimental import pallas as pl
from jax.experimental.pallas import tpu as pltpu

KERNEL_SIZES = (3, 4, 5, 3)
K_MAX = max(KERNEL_SIZES)

MXU_DTYPE = jnp.bfloat16            # MXU-native; f32 accumulate keeps precision
TARGET_ROWS = 1024                  # target M = B_TILE * S per grid step
VMEM_ACT_BUDGET = 12 * 1024 * 1024  # activation share of scoped VMEM (x2 buffers)


def cnn_classifier_kernel(emb_ref, labels_ref, w_all_ref, bias_mask_ref,
                          w_head_ref, out_ref):
    b, s_pad, e = emb_ref.shape
    s = s_pad - (K_MAX - 1)                     # valid sequence length
    nc = w_all_ref.shape[1]                     # 4 * out_channels (128)

    # Fused conv for all 4 branches: K_MAX tap-shifted, lane-dense MXU matmuls
    # accumulated in f32.  Taps past a branch's kernel size hit zero weights.
    acc = jnp.zeros((b * s, nc), jnp.float32)
    for j in range(K_MAX):                      # static -> fully unrolled
        window = emb_ref[:, j:j + s, :].reshape(b * s, e)
        acc += jnp.dot(window, w_all_ref[j * e:(j + 1) * e, :],
                       preferred_element_type=jnp.float32)

    # Bias + ReLU, zero invalid window positions (t > S - k_c), max over seq.
    # Zeroing (not -inf) is exact because ReLU outputs are >= 0 and every
    # branch has >= 1 valid position (wrapper asserts S >= K_MAX).
    conv = jnp.maximum(acc + bias_mask_ref[0:1, :], 0.0)            # (B*S, 4C)
    mask = bias_mask_ref[8:8 + s, :]                                # (S, 4C)
    feat = jnp.max(conv.reshape(b, s, nc) * mask[None], axis=1)     # (B, 4C)

    # FC head (f32, lane-padded to 128 cols) with label path + biases folded.
    wf = w_head_ref[0:nc, :]                                        # (4C, OUTP)
    wl = w_head_ref[nc:nc + 8, :]                                   # (8,  OUTP)
    out_ref[...] = (jnp.dot(feat, wf, preferred_element_type=jnp.float32)
                    + jnp.dot(labels_ref[...], wl,
                              preferred_element_type=jnp.float32))


def cnn_classifier_forward(x_tokens, labels, params, mxu_dtype=MXU_DTYPE):
    # --- JAX glue: bf16 embedding gather + parameter packing/folding ---
    emb = params["embed"].astype(mxu_dtype)[x_tokens]               # (B, S, E)
    B, S, E = emb.shape
    assert S >= K_MAX, "mask-after-ReLU trick needs S >= max kernel size"
    C = params["conv_w"][0].shape[0]
    NC = len(KERNEL_SIZES) * C
    out_size = params["fc_b"].shape[0]
    OUT_PAD = -(-out_size // 128) * 128                             # lane-dense

    # Pad the sequence tail so in-kernel taps past the end read zeros.
    emb_pad = jnp.pad(emb, ((0, 0), (0, K_MAX - 1), (0, 0)))        # (B, S+4, E)

    # Fused conv weight (K_MAX*E, NC); taps >= k_branch are zero.
    w_all = jnp.zeros((K_MAX * E, NC), jnp.float32)
    for i, (w, k) in enumerate(zip(params["conv_w"], KERNEL_SIZES)):
        blk = jnp.transpose(w, (1, 2, 0)).reshape(k * E, C)         # (k*E, C)
        w_all = w_all.at[:k * E, i * C:(i + 1) * C].set(blk)
    w_all = w_all.astype(mxu_dtype)

    # Packed conv bias (rows 0:8, replicated) + valid-position mask (rows 8:8+S).
    bias_all = jnp.concatenate(params["conv_b"]).reshape(1, NC)
    t = jnp.arange(S)
    mask = jnp.concatenate(
        [jnp.tile((t <= S - k).astype(jnp.float32)[:, None], (1, C))
         for k in KERNEL_SIZES], axis=1)                            # (S, NC)
    bias_mask = jnp.concatenate([jnp.tile(bias_all, (8, 1)), mask], axis=0)

    # Fold input2 linear into fc1 (exact: no nonlinearity between them); keep
    # the head in f32 and pad output columns to a full 128-lane vreg.
    fc_w = params["fc_w"]                                           # (out, NC+50)
    wfeat_t = fc_w[:, :NC].T                                        # (NC, out)
    wlab_t = fc_w[:, NC:].T                                         # (50, out)
    w_lab_fold = params["in2_w"].T @ wlab_t                         # (6, out)
    b_fold = params["in2_b"] @ wlab_t + params["fc_b"]              # (out,)
    w_head = jnp.concatenate(
        [wfeat_t, w_lab_fold, b_fold.reshape(1, -1),
         jnp.zeros((1, out_size), jnp.float32)], axis=0)            # (NC+8, out)
    w_head = jnp.pad(w_head, ((0, 0), (0, OUT_PAD - out_size)))     # (NC+8, OUTP)

    # labels + ones column (picks up the folded bias) + zero pad to 8 lanes.
    labels_aug = jnp.concatenate(
        [labels.astype(jnp.float32), jnp.ones((B, 1), jnp.float32),
         jnp.zeros((B, 1), jnp.float32)], axis=1)                   # (B, 8)

    # --- batch tiling: M = B_TILE*S ~ TARGET_ROWS, capped by the VMEM budget
    #     for the double-buffered activation block; keep >= 2 grid steps for
    #     larger batches so "parallel" can shard across v7x's two TensorCores.
    itemsize = jnp.dtype(mxu_dtype).itemsize
    bt_rows = max(1, TARGET_ROWS // S)
    bt_vmem = max(1, VMEM_ACT_BUDGET // (2 * (S + K_MAX - 1) * E * itemsize))
    bt_cap = min(bt_rows, bt_vmem)
    if B <= 8 and B <= bt_cap:
        B_TILE = B                                  # single step, no padding
    else:
        B_TILE = min(bt_cap, -(-B // 2))            # >= 2 steps when possible
        B_TILE = max(8, (B_TILE // 8) * 8)          # sublane-aligned tiles
    pad_b = (-B) % B_TILE
    if pad_b:
        emb_pad = jnp.pad(emb_pad, ((0, pad_b), (0, 0), (0, 0)))
        labels_aug = jnp.pad(labels_aug, ((0, pad_b), (0, 0)))
    Bp = B + pad_b

    # TODO(synk): nn.Dropout(0.5) is identity at inference; training-mode
    # (scaled Bernoulli) dropout is not modeled.
    out = pl.pallas_call(
        cnn_classifier_kernel,
        out_shape=jax.ShapeDtypeStruct((Bp, OUT_PAD), jnp.float32),
        grid_spec=pltpu.PrefetchScalarGridSpec(
            num_scalar_prefetch=0,
            grid=(Bp // B_TILE,),
            in_specs=[
                pl.BlockSpec((B_TILE, S + K_MAX - 1, E), lambda i: (i, 0, 0)),
                pl.BlockSpec((B_TILE, 8), lambda i: (i, 0)),
                # Grid-invariant operands (constant block index -> fetched once;
                # pipeline_mode=pl.Buffered(1) would also drop their 2nd buffer,
                # left at the default for broad compiler compatibility).
                pl.BlockSpec((K_MAX * E, NC), lambda i: (0, 0)),
                pl.BlockSpec((8 + S, NC), lambda i: (0, 0)),
                pl.BlockSpec((NC + 8, OUT_PAD), lambda i: (0, 0)),
            ],
            out_specs=pl.BlockSpec((B_TILE, OUT_PAD), lambda i: (i, 0)),
        ),
        compiler_params=pltpu.CompilerParams(
            dimension_semantics=("parallel",),
            # 32 MiB scoped VMEM: safe on v5e/v6e (128 MiB physical) and equal
            # to the v7x default (64 MiB physical); blocks here sit far below.
            vmem_limit_bytes=32 * 1024 * 1024),
    )(emb_pad, labels_aug, w_all, bias_mask, w_head)
    return out[:B, :out_size]


def reference_forward(x_tokens, labels, params):
    """Pure-JAX f32 reference matching the PyTorch forward (eval mode)."""
    emb = params["embed"][x_tokens].astype(jnp.float32)
    B, S, E = emb.shape
    pooled = []
    for w, b in zip(params["conv_w"], params["conv_b"]):
        C, k, _ = w.shape
        L = S - k + 1
        windows = jnp.stack([emb[:, t:t + k, :] for t in range(L)], axis=1)
        conv = jnp.einsum("blke,cke->blc", windows, w) + b[None, None, :]
        conv = jnp.maximum(conv, 0.0)
        pooled.append(jnp.max(conv, axis=1))
    feat = jnp.concatenate(pooled, axis=1)
    in2 = labels @ params["in2_w"].T + params["in2_b"]
    combined = jnp.concatenate([feat, in2], axis=1)
    return combined @ params["fc_w"].T + params["fc_b"]


def init_params(key, vocab_size, output_size, embedding_size, out_channels):
    keys = jax.random.split(key, 16)
    it = iter(keys)
    params = {
        "embed": jax.random.normal(next(it), (vocab_size, embedding_size),
                                   jnp.float32) * 0.1,
        "conv_w": [],
        "conv_b": [],
    }
    for k in KERNEL_SIZES:
        fan_in = k * embedding_size
        params["conv_w"].append(
            jax.random.normal(next(it), (out_channels, k, embedding_size),
                              jnp.float32) / jnp.sqrt(fan_in))
        params["conv_b"].append(
            jax.random.normal(next(it), (out_channels,), jnp.float32) * 0.01)
    output2 = 50
    params["in2_w"] = jax.random.normal(next(it), (output2, 6),
                                        jnp.float32) / jnp.sqrt(6.0)
    params["in2_b"] = jax.random.normal(next(it), (output2,), jnp.float32) * 0.01
    fc_in = len(KERNEL_SIZES) * out_channels + output2
    params["fc_w"] = jax.random.normal(next(it), (output_size, fc_in),
                                       jnp.float32) / jnp.sqrt(fc_in)
    params["fc_b"] = jax.random.normal(next(it), (output_size,), jnp.float32) * 0.01
    return params


if __name__ == "__main__":
    # Small, module-consistent shapes (4*CHAN = 128 -> lane-dense conv output).
    VOCAB, OUT, EMB, CHAN = 64, 8, 128, 32
    BATCH, SEQ = 2, 16

    root = jax.random.PRNGKey(0)
    k_params, k_tok, k_lab = jax.random.split(root, 3)

    params = init_params(k_params, VOCAB, OUT, EMB, CHAN)
    x_tokens = jax.random.randint(k_tok, (BATCH, SEQ), 0, VOCAB, dtype=jnp.int32)
    labels = jax.random.normal(k_lab, (BATCH, 6), jnp.float32)

    y = cnn_classifier_forward(x_tokens, labels, params)
    y = jax.block_until_ready(y)

    y_ref = reference_forward(x_tokens, labels, params)
    assert y.shape == (BATCH, OUT)
    # bf16 MXU operands (f32 accumulate): ~1e-3 relative error expected.
    assert jnp.allclose(y, y_ref, atol=2e-2, rtol=2e-2), "mismatch vs reference"

    print("KERNEL_OK")
</pallas_src>

<mosaic_0001>
module attributes {stable_mosaic.version = 11 : i64} {
  func.func @cnn_classifier_kernel(%arg0: i32, %arg1: memref<2x20x128xbf16, #tpu.memory_space<vmem>>, %arg2: memref<2x8xf32, #tpu.memory_space<vmem>>, %arg3: memref<640x128xbf16, #tpu.memory_space<vmem>>, %arg4: memref<24x128xf32, #tpu.memory_space<vmem>>, %arg5: memref<136x128xf32, #tpu.memory_space<vmem>>, %arg6: memref<2x128xf32, #tpu.memory_space<vmem>>) attributes {dimension_semantics = [#tpu.dimension_semantics<parallel>], iteration_bounds = array<i64: 1>, scalar_prefetch = 0 : i64, scratch_operands = 0 : i64, tpu.core_type = #tpu.core_type<tc>, window_params = [{transform_indices = @transform_0, window_bounds = array<i64: 2, 20, 128>}, {transform_indices = @transform_1, window_bounds = array<i64: 2, 8>}, {pipeline_mode = #tpu.pipeline_mode<synchronous>, transform_indices = @transform_2, window_bounds = array<i64: 640, 128>}, {pipeline_mode = #tpu.pipeline_mode<synchronous>, transform_indices = @transform_3, window_bounds = array<i64: 24, 128>}, {pipeline_mode = #tpu.pipeline_mode<synchronous>, transform_indices = @transform_4, window_bounds = array<i64: 136, 128>}, {transform_indices = @transform_5, window_bounds = array<i64: 2, 128>}]} {
    %cst = arith.constant 0.000000e+00 : f32
    %0 = vector.broadcast %cst : f32 to vector<32x128xf32>
    %c0 = arith.constant 0 : index
    %c0_0 = arith.constant 0 : index
    %c0_1 = arith.constant 0 : index
    %1 = vector.load %arg1[%c0, %c0_0, %c0_1] : memref<2x20x128xbf16, #tpu.memory_space<vmem>>, vector<2x16x128xbf16>
    %2 = vector.shape_cast %1 : vector<2x16x128xbf16> to vector<32x128xbf16>
    %c0_2 = arith.constant 0 : index
    %c0_3 = arith.constant 0 : index
    %3 = vector.load %arg3[%c0_2, %c0_3] : memref<640x128xbf16, #tpu.memory_space<vmem>>, vector<128x128xbf16>
    %cst_4 = arith.constant dense<0.000000e+00> : vector<32x128xf32>
    %4 = tpu.matmul %2, %3, %cst_4 {dimension_numbers = #tpu.dot_dimension_numbers<[1], [0], [0], [1], [0, 0, 1, 1], [], []>} : vector<32x128xbf16>, vector<128x128xbf16>, vector<32x128xf32> -> vector<32x128xf32>
    %5 = arith.addf %0, %4 : vector<32x128xf32>
    %c0_5 = arith.constant 0 : index
    %c1 = arith.constant 1 : index
    %c0_6 = arith.constant 0 : index
    %6 = vector.load %arg1[%c0_5, %c1, %c0_6] : memref<2x20x128xbf16, #tpu.memory_space<vmem>>, vector<2x16x128xbf16>
    %7 = vector.shape_cast %6 : vector<2x16x128xbf16> to vector<32x128xbf16>
    %c128 = arith.constant 128 : index
    %c0_7 = arith.constant 0 : index
    %8 = vector.load %arg3[%c128, %c0_7] : memref<640x128xbf16, #tpu.memory_space<vmem>>, vector<128x128xbf16>
    %cst_8 = arith.constant dense<0.000000e+00> : vector<32x128xf32>
    %9 = tpu.matmul %7, %8, %cst_8 {dimension_numbers = #tpu.dot_dimension_numbers<[1], [0], [0], [1], [0, 0, 1, 1], [], []>} : vector<32x128xbf16>, vector<128x128xbf16>, vector<32x128xf32> -> vector<32x128xf32>
    %10 = arith.addf %5, %9 : vector<32x128xf32>
    %c0_9 = arith.constant 0 : index
    %c2 = arith.constant 2 : index
    %c0_10 = arith.constant 0 : index
    %11 = vector.load %arg1[%c0_9, %c2, %c0_10] : memref<2x20x128xbf16, #tpu.memory_space<vmem>>, vector<2x16x128xbf16>
    %12 = vector.shape_cast %11 : vector<2x16x128xbf16> to vector<32x128xbf16>
    %c256 = arith.constant 256 : index
    %c0_11 = arith.constant 0 : index
    %13 = vector.load %arg3[%c256, %c0_11] : memref<640x128xbf16, #tpu.memory_space<vmem>>, vector<128x128xbf16>
    %cst_12 = arith.constant dense<0.000000e+00> : vector<32x128xf32>
    %14 = tpu.matmul %12, %13, %cst_12 {dimension_numbers = #tpu.dot_dimension_numbers<[1], [0], [0], [1], [0, 0, 1, 1], [], []>} : vector<32x128xbf16>, vector<128x128xbf16>, vector<32x128xf32> -> vector<32x128xf32>
    %15 = arith.addf %10, %14 : vector<32x128xf32>
    %c0_13 = arith.constant 0 : index
    %c3 = arith.constant 3 : index
    %c0_14 = arith.constant 0 : index
    %16 = vector.load %arg1[%c0_13, %c3, %c0_14] : memref<2x20x128xbf16, #tpu.memory_space<vmem>>, vector<2x16x128xbf16>
    %17 = vector.shape_cast %16 : vector<2x16x128xbf16> to vector<32x128xbf16>
    %c384 = arith.constant 384 : index
    %c0_15 = arith.constant 0 : index
    %18 = vector.load %arg3[%c384, %c0_15] : memref<640x128xbf16, #tpu.memory_space<vmem>>, vector<128x128xbf16>
    %cst_16 = arith.constant dense<0.000000e+00> : vector<32x128xf32>
    %19 = tpu.matmul %17, %18, %cst_16 {dimension_numbers = #tpu.dot_dimension_numbers<[1], [0], [0], [1], [0, 0, 1, 1], [], []>} : vector<32x128xbf16>, vector<128x128xbf16>, vector<32x128xf32> -> vector<32x128xf32>
    %20 = arith.addf %15, %19 : vector<32x128xf32>
    %c0_17 = arith.constant 0 : index
    %c4 = arith.constant 4 : index
    %c0_18 = arith.constant 0 : index
    %21 = vector.load %arg1[%c0_17, %c4, %c0_18] : memref<2x20x128xbf16, #tpu.memory_space<vmem>>, vector<2x16x128xbf16>
    %22 = vector.shape_cast %21 : vector<2x16x128xbf16> to vector<32x128xbf16>
    %c512 = arith.constant 512 : index
    %c0_19 = arith.constant 0 : index
    %23 = vector.load %arg3[%c512, %c0_19] : memref<640x128xbf16, #tpu.memory_space<vmem>>, vector<128x128xbf16>
    %cst_20 = arith.constant dense<0.000000e+00> : vector<32x128xf32>
    %24 = tpu.matmul %22, %23, %cst_20 {dimension_numbers = #tpu.dot_dimension_numbers<[1], [0], [0], [1], [0, 0, 1, 1], [], []>} : vector<32x128xbf16>, vector<128x128xbf16>, vector<32x128xf32> -> vector<32x128xf32>
    %25 = arith.addf %20, %24 : vector<32x128xf32>
    %c0_21 = arith.constant 0 : index
    %c0_22 = arith.constant 0 : index
    %26 = vector.load %arg4[%c0_21, %c0_22] : memref<24x128xf32, #tpu.memory_space<vmem>>, vector<1x128xf32>
    %27 = vector.broadcast %26 : vector<1x128xf32> to vector<32x128xf32>
    %28 = arith.addf %25, %27 : vector<32x128xf32>
    %cst_23 = arith.constant 0.000000e+00 : f32
    %29 = vector.broadcast %cst_23 : f32 to vector<32x128xf32>
    %30 = arith.maximumf %28, %29 : vector<32x128xf32>
    %c8 = arith.constant 8 : index
    %c0_24 = arith.constant 0 : index
    %31 = vector.load %arg4[%c8, %c0_24] : memref<24x128xf32, #tpu.memory_space<vmem>>, vector<16x128xf32>
    %32 = vector.shape_cast %30 : vector<32x128xf32> to vector<2x16x128xf32>
    %33 = vector.shape_cast %31 : vector<16x128xf32> to vector<1x16x128xf32>
    %34 = vector.broadcast %33 : vector<1x16x128xf32> to vector<2x16x128xf32>
    %35 = arith.mulf %32, %34 : vector<2x16x128xf32>
    %cst_25 = arith.constant dense<0xFF800000> : vector<2x128xf32>
    %36 = vector.multi_reduction <maximumf>, %35, %cst_25 [1] : vector<2x16x128xf32> to vector<2x128xf32>
    %c0_26 = arith.constant 0 : index
    %c0_27 = arith.constant 0 : index
    %37 = vector.load %arg5[%c0_26, %c0_27] : memref<136x128xf32, #tpu.memory_space<vmem>>, vector<128x128xf32>
    %c128_28 = arith.constant 128 : index
    %c0_29 = arith.constant 0 : index
    %38 = vector.load %arg5[%c128_28, %c0_29] : memref<136x128xf32, #tpu.memory_space<vmem>>, vector<8x128xf32>
    %cst_30 = arith.constant dense<0.000000e+00> : vector<2x128xf32>
    %39 = tpu.matmul %36, %37, %cst_30 {dimension_numbers = #tpu.dot_dimension_numbers<[1], [0], [0], [1], [0, 0, 1, 1], [], []>} : vector<2x128xf32>, vector<128x128xf32>, vector<2x128xf32> -> vector<2x128xf32>
    %c0_31 = arith.constant 0 : index
    %c0_32 = arith.constant 0 : index
    %40 = vector.load %arg2[%c0_31, %c0_32] : memref<2x8xf32, #tpu.memory_space<vmem>>, vector<2x8xf32>
    %cst_33 = arith.constant dense<0.000000e+00> : vector<2x128xf32>
    %41 = tpu.matmul %40, %38, %cst_33 {dimension_numbers = #tpu.dot_dimension_numbers<[1], [0], [0], [1], [0, 0, 1, 1], [], []>} : vector<2x8xf32>, vector<8x128xf32>, vector<2x128xf32> -> vector<2x128xf32>
    %42 = arith.addf %39, %41 : vector<2x128xf32>
    %c0_34 = arith.constant 0 : index
    %c0_35 = arith.constant 0 : index
    %43 = vector.load %arg6[%c0_34, %c0_35] : memref<2x128xf32, #tpu.memory_space<vmem>>, vector<2x128xf32>
    tpu.vector_store %arg6[%c0_34, %c0_35], %42 {strides = array<i32>} : memref<2x128xf32, #tpu.memory_space<vmem>>, vector<2x128xf32>,
    return
  }
  func.func @transform_0(%arg0: i32) -> (i32, i32, i32) {
    %c0_i32 = arith.constant 0 : i32
    %c0_i32_0 = arith.constant 0 : i32
    %c0_i32_1 = arith.constant 0 : i32
    return %arg0, %c0_i32, %c0_i32_0 : i32, i32, i32
  }
  func.func @transform_1(%arg0: i32) -> (i32, i32) {
    %c0_i32 = arith.constant 0 : i32
    %c0_i32_0 = arith.constant 0 : i32
    return %arg0, %c0_i32 : i32, i32
  }
  func.func @transform_2(%arg0: i32) -> (i32, i32) {
    %c0_i32 = arith.constant 0 : i32
    %c0_i32_0 = arith.constant 0 : i32
    %c0_i32_1 = arith.constant 0 : i32
    return %c0_i32, %c0_i32_0 : i32, i32
  }
  func.func @transform_3(%arg0: i32) -> (i32, i32) {
    %c0_i32 = arith.constant 0 : i32
    %c0_i32_0 = arith.constant 0 : i32
    %c0_i32_1 = arith.constant 0 : i32
    return %c0_i32, %c0_i32_0 : i32, i32
  }
  func.func @transform_4(%arg0: i32) -> (i32, i32) {
    %c0_i32 = arith.constant 0 : i32
    %c0_i32_0 = arith.constant 0 : i32
    %c0_i32_1 = arith.constant 0 : i32
    return %c0_i32, %c0_i32_0 : i32, i32
  }
  func.func @transform_5(%arg0: i32) -> (i32, i32) {
    %c0_i32 = arith.constant 0 : i32
    %c0_i32_0 = arith.constant 0 : i32
    return %arg0, %c0_i32 : i32, i32
  }
}

</mosaic_0001>

<llo_original>
// kernel: tpu_custom_call.1
$region0: #{tpu_custom_call.1}
  #allocation0 [shape = 'u32[]', space=smem, size = 0x4, offset = 0x4, fixed_abs, tag = 'smem constant byte address 0x4 - core index']
  #allocation1 [shape = 'u32[144,128]{1,0:T(1,128)}', space=vmem, size = 0x12000, scoped, tag = 'internal scratch']
  %s0 = inlined_call_operand.vmem [shape: bf16[2,20,128], index: 0, kind: input, shape index: {}]
  %s1 = inlined_call_operand.vmem [shape: f32[2,8], index: 1, kind: input, shape index: {}]
  %s2 = inlined_call_operand.hbm [shape: bf16[640,128], index: 2, kind: input, shape index: {}]
  %s3 = inlined_call_operand.vmem [shape: f32[24,128], index: 3, kind: input, shape index: {}]
  %s4 = inlined_call_operand.hbm [shape: f32[136,128], index: 4, kind: input, shape index: {}]
  %s5 = inlined_call_operand.hbm [shape: f32[2,128], index: 5, kind: output, shape index: {}]
  %s6 = sld [smem:[#allocation0]]
  $region38: #{tpu_custom_call.1} parent=0
    _
  %s8 = ssub.s32 1, %s6
  %s9 = scalar_select 0, %s8, %s6
  $region1: #{tpu_custom_call.1} parent=0
    #allocation2 [shape = 'u8[163840]{0}', space=vmem, size = 0x28000, scoped, tag = 'input window, operand 2, single buffered']
    #allocation3 [shape = 's32[1]{0}', space=sflag, size = 0x4, scoped, tag = 'scoped memory for tpu_custom_call.1']
    #allocation4 [shape = 's32[1]{0}', space=sflag, size = 0x4, scoped, tag = 'scoped memory for tpu_custom_call.1']
    #allocation5 [shape = 'u8[69632]{0}', space=vmem, size = 0x11000, scoped, tag = 'input window, operand 4, single buffered']
    #allocation6 [shape = 's32[1]{0}', space=sflag, size = 0x4, scoped, tag = 'scoped memory for tpu_custom_call.1']
    #allocation7 [shape = 'u8[1024]{0}', space=vmem, size = 0x400, scoped, tag = 'output window, operand 0, single buffered']
    %10 = vsyncpa [#allocation3], 0
    %11 = vsyncpa [#allocation6], 0
    %12 = vsyncpa [#allocation4], 0
    // Predicated region
    $region2: #{tpu_custom_call.1} parent=1 // pred_check
      _
    $region3: #{tpu_custom_call.1} parent=1 // pred_check_branch
      %14 = sbr.rel (0) target = $region5
    $region4: #{tpu_custom_call.1} parent=1 // pred_region
      _
    $region5: #{tpu_custom_call.1} parent=1 // pred_fallthru
      _
    // Predicated region
    $region6: #{tpu_custom_call.1} parent=1 // pred_check
      _
    $region7: #{tpu_custom_call.1} parent=1 // pred_check_branch
      %16 = sbr.rel (0) target = $region9
    $region8: #{tpu_custom_call.1} parent=1 // pred_region
      _
    $region9: #{tpu_custom_call.1} parent=1 // pred_fallthru
      _
    // Predicated region
    $region10: #{tpu_custom_call.1} parent=1 // pred_check
      _
    $region11: #{tpu_custom_call.1} parent=1 // pred_check_branch
      %18 = sbr.rel (0) target = $region13
    $region12: #{tpu_custom_call.1} parent=1 // pred_region
      %s20 = ssub.s32 5120, 5120
      %21 = vsyncadd [#allocation3], %s20
      %s22 = sshll.u32 [#allocation2], 4
      %s23 = int_to_ptr.vmem [resolvable:$true] %s22
      %28 = dma.hbm_to_vmem [thread:$0]  %s2, 5120, %s23, [#allocation3], 64, 64, 4
    $region13: #{tpu_custom_call.1} parent=1 // pred_fallthru
      _
    // Predicated region
    $region14: #{tpu_custom_call.1} parent=1 // pred_check
      _
    $region15: #{tpu_custom_call.1} parent=1 // pred_check_branch
      %30 = sbr.rel (0) target = $region17
    $region16: #{tpu_custom_call.1} parent=1 // pred_region
      _
    $region17: #{tpu_custom_call.1} parent=1 // pred_fallthru
      _
    // Predicated region
    $region18: #{tpu_custom_call.1} parent=1 // pred_check
      _
    $region19: #{tpu_custom_call.1} parent=1 // pred_check_branch
      %32 = sbr.rel (0) target = $region21
    $region20: #{tpu_custom_call.1} parent=1 // pred_region
      %s34 = ssub.s32 2176, 2176
      %35 = vsyncadd [#allocation6], %s34
      %s36 = sshll.u32 [#allocation5], 4
      %s37 = int_to_ptr.vmem [resolvable:$true] %s36
      %42 = dma.hbm_to_vmem [thread:$0]  %s4, 2176, %s37, [#allocation6], 128, 128, 8
    $region21: #{tpu_custom_call.1} parent=1 // pred_fallthru
      _
    // Predicated region
    $region22: #{tpu_custom_call.1} parent=1 // pred_check
      _
    $region23: #{tpu_custom_call.1} parent=1 // pred_check_branch
      %44 = sbr.rel (0) target = $region25
    $region24: #{tpu_custom_call.1} parent=1 // pred_region
      %45 = dma.done [#allocation3], 5120
    $region25: #{tpu_custom_call.1} parent=1 // pred_fallthru
      _
    // Predicated region
    $region26: #{tpu_custom_call.1} parent=1 // pred_check
      _
    $region27: #{tpu_custom_call.1} parent=1 // pred_check_branch
      %47 = sbr.rel (0) target = $region29
    $region28: #{tpu_custom_call.1} parent=1 // pred_region
      %48 = dma.done [#allocation6], 2176
    $region29: #{tpu_custom_call.1} parent=1 // pred_fallthru
      _
    %v50 = vld [vmem:[%s0] sm:$0xf]
    %v51 = vld [vmem:[%s0 + $0x4] sm:$0xf]
    %v52 = vld [vmem:[%s0 + $0xc] sm:$0xf]
    %v53 = vld [vmem:[%s0 + $0x10] sm:$0xf]
    %v54 = vld [vmem:[#allocation2] sm:$0xf]
    %v55 = vld [vmem:[#allocation2 + $0x4] sm:$0xf]
    %v56 = vld [vmem:[#allocation2 + $0x8] sm:$0xf]
    %v57 = vld [vmem:[#allocation2 + $0xc] sm:$0xf]
    %v58 = vld [vmem:[#allocation2 + $0x10] sm:$0xf]
    %v59 = vld [vmem:[#allocation2 + $0x14] sm:$0xf]
    %v60 = vld [vmem:[#allocation2 + $0x18] sm:$0xf]
    %v61 = vld [vmem:[#allocation2 + $0x1c] sm:$0xf]
    %v62 = vld [vmem:[#allocation2 + $0x20] sm:$0xf]
    %v63 = vld [vmem:[#allocation2 + $0x24] sm:$0xf]
    %v64 = vld [vmem:[#allocation2 + $0x28] sm:$0xf]
    %v65 = vld [vmem:[#allocation2 + $0x2c] sm:$0xf]
    %v66 = vld [vmem:[#allocation2 + $0x30] sm:$0xf]
    %v67 = vld [vmem:[#allocation2 + $0x34] sm:$0xf]
    %v68 = vld [vmem:[#allocation2 + $0x38] sm:$0xf]
    %v69 = vld [vmem:[#allocation2 + $0x3c] sm:$0xf]
    %v70 = vld [vmem:[%s0 + $0x8] sm:$0x1]
    %v71 = vld [vmem:[%s0 + $0x14] sm:$0x1]
    %vm72 = vsmask.f32 3328
    %vm73 = vsmask.f32 7440
    %vm74 = vmor %vm72, %vm73
    %v76 = vshrl.u32 %v50, 16
    %v78 = vrot.slane %v76, 4
    %v79 = vshll.u32 %v50, 16
    %v81 = vrot.slane %v79, 5
    %v82 = vor.u32 %v78, %v81
    %v83 = vrot.slane %v82, 4
    %v85 = vshll.u32 %v51, 16
    %v87 = vrot.slane %v85, 5
    %v88 = vsel %vm74, %v83, %v87
    %v89 = vshrl.u32 %v51, 16
    %v91 = vrot.slane %v89, 4
    %v92 = vor.u32 %v91, %v87
    %v93 = vrot.slane %v92, 4
    %v95 = vshll.u32 %v70, 16
    %v97 = vrot.slane %v95, 5
    %v98 = vsel %vm74, %v93, %v97
    %v100 = vshrl.u32 %v52, 16
    %v102 = vrot.slane %v100, 4
    %v103 = vshll.u32 %v52, 16
    %v105 = vrot.slane %v103, 5
    %v106 = vor.u32 %v102, %v105
    %v107 = vrot.slane %v106, 4
    %v109 = vshll.u32 %v53, 16
    %v111 = vrot.slane %v109, 5
    %v112 = vsel %vm74, %v107, %v111
    %v113 = vshrl.u32 %v53, 16
    %v115 = vrot.slane %v113, 4
    %v116 = vor.u32 %v115, %v111
    %v117 = vrot.slane %v116, 4
    %v119 = vshll.u32 %v71, 16
    %v121 = vrot.slane %v119, 5
    %v122 = vsel %vm74, %v117, %v121
    %v123 = vld [vmem:[#allocation2 + $0x40] sm:$0xf]
    %v124 = vld [vmem:[#allocation2 + $0x44] sm:$0xf]
    %v125 = vld [vmem:[#allocation2 + $0x48] sm:$0xf]
    %v126 = vld [vmem:[#allocation2 + $0x4c] sm:$0xf]
    %v127 = vld [vmem:[#allocation2 + $0x50] sm:$0xf]
    %v128 = vld [vmem:[#allocation2 + $0x54] sm:$0xf]
    %v129 = vld [vmem:[#allocation2 + $0x58] sm:$0xf]
    %v130 = vld [vmem:[#allocation2 + $0x5c] sm:$0xf]
    %v131 = vld [vmem:[#allocation2 + $0x60] sm:$0xf]
    %v132 = vld [vmem:[#allocation2 + $0x64] sm:$0xf]
    %v133 = vld [vmem:[#allocation2 + $0x68] sm:$0xf]
    %v134 = vld [vmem:[#allocation2 + $0x6c] sm:$0xf]
    %v135 = vld [vmem:[#allocation2 + $0x70] sm:$0xf]
    %v136 = vld [vmem:[#allocation2 + $0x74] sm:$0xf]
    %v137 = vld [vmem:[#allocation2 + $0x78] sm:$0xf]
    %v138 = vld [vmem:[#allocation2 + $0x7c] sm:$0xf]
    %v139 = vunpack.c.l.b16 %v88
    %v140 = vunpack.c.l.b16 %v98
    %v141 = vunpack.c.l.b16 %v112
    %v142 = vunpack.c.l.b16 %v122
    %v143 = vpack.c.b16 %v140, %v139
    %v144 = vpack.c.b16 %v142, %v141
    %v163 = vunpack.c.l.b16 %v123
    %v164 = vunpack.c.l.b16 %v124
    %v165 = vunpack.c.l.b16 %v125
    %v166 = vunpack.c.l.b16 %v126
    %v167 = vunpack.c.l.b16 %v127
    %v168 = vunpack.c.l.b16 %v128
    %v169 = vunpack.c.l.b16 %v129
    %v170 = vunpack.c.l.b16 %v130
    %v171 = vunpack.c.l.b16 %v131
    %v172 = vunpack.c.l.b16 %v132
    %v173 = vunpack.c.l.b16 %v133
    %v174 = vunpack.c.l.b16 %v134
    %v175 = vunpack.c.l.b16 %v135
    %v176 = vunpack.c.l.b16 %v136
    %v177 = vunpack.c.l.b16 %v137
    %v178 = vunpack.c.l.b16 %v138
    %v179 = vpack.c.b16 %v164, %v163
    %v180 = vpack.c.b16 %v166, %v165
    %v181 = vpack.c.b16 %v168, %v167
    %v182 = vpack.c.b16 %v170, %v169
    %v183 = vpack.c.b16 %v172, %v171
    %v184 = vpack.c.b16 %v174, %v173
    %v185 = vpack.c.b16 %v176, %v175
    %v186 = vpack.c.b16 %v178, %v177
    %195 = vmatprep.subr.bf16.mxu0 0
    %196 = vmatpush1.bf16.msra.mxu0 %v186
    %197 = vmatprep.subr.bf16.mxu0 0
    %198 = vmatpush1.bf16.msra.mxu0 %v185
    %199 = vmatprep.subr.bf16.mxu0 0
    %200 = vmatpush1.bf16.msra.mxu0 %v184
    %201 = vmatprep.subr.bf16.mxu0 0
    %202 = vmatpush1.bf16.msra.mxu0 %v183
    %203 = vmatprep.subr.bf16.mxu0 0
    %204 = vmatpush1.bf16.msra.mxu0 %v182
    %205 = vmatprep.subr.bf16.mxu0 0
    %206 = vmatpush1.bf16.msra.mxu0 %v181
    %207 = vmatprep.subr.bf16.mxu0 0
    %208 = vmatpush1.bf16.msra.mxu0 %v180
    %209 = vmatprep.subr.bf16.mxu0 0
    %210 = vmatpush1.bf16.msra.mxu0 %v179
    %211 = vmatprep.subr.bf16.mxu0 0
    %212 = vmatpush2.bf16.msra.mxu0 0
    %213 = vmatprep.subr.bf16.mxu0 0
    %214 = vmatpush2.bf16.msra.mxu0 0
    %215 = vmatprep.subr.bf16.mxu0 0
    %216 = vmatpush2.bf16.msra.mxu0 0
    %217 = vmatprep.subr.bf16.mxu0 0
    %218 = vmatpush2.bf16.msra.mxu0 0
    %219 = vmatprep.subr.bf16.mxu0 0
    %220 = vmatpush2.bf16.msra.mxu0 0
    %221 = vmatprep.subr.bf16.mxu0 0
    %222 = vmatpush2.bf16.msra.mxu0 0
    %223 = vmatprep.subr.bf16.mxu0 0
    %224 = vmatpush2.bf16.msra.mxu0 0
    %225 = vmatprep.subr.bf16.mxu0 0
    %226 = vmatpush2.bf16.msra.mxu0 0
    %227 = vmatprep.mubr.bf16.mxu0 0
    %228 = vmatmul.mubr.bf16.gmra.mxu0 %v143
    %v229 = vpop.f32.mrf.mxu0
    %v230 = vadd.f32 0.0, %v229
    %v231 = vpop.f32.mrf.mxu0
    %v232 = vpop.f32.mrf.mxu0
    %v233 = vadd.f32 0.0, %v232
    %v234 = vpop.f32.mrf.mxu0
    %235 = vmatprep.mubr.bf16.mxu0 0
    %236 = vmatmul.mubr.bf16.gmra.mxu0 %v144
    %v237 = vpop.f32.mrf.mxu0
    %v238 = vadd.f32 0.0, %v237
    %v239 = vpop.f32.mrf.mxu0
    %v240 = vpop.f32.mrf.mxu0
    %v241 = vadd.f32 0.0, %v240
    %v242 = vpop.f32.mrf.mxu0
    %243 = vdwg.mxu0
    %v248 = vunpack.c.l.b16 %v50
    %v249 = vunpack.c.l.b16 %v51
    %v250 = vunpack.c.l.b16 %v52
    %v251 = vunpack.c.l.b16 %v53
    %v252 = vpack.c.b16 %v249, %v248
    %v253 = vpack.c.b16 %v251, %v250
    %v272 = vunpack.c.l.b16 %v54
    %v273 = vunpack.c.l.b16 %v55
    %v274 = vunpack.c.l.b16 %v56
    %v275 = vunpack.c.l.b16 %v57
    %v276 = vunpack.c.l.b16 %v58
    %v277 = vunpack.c.l.b16 %v59
    %v278 = vunpack.c.l.b16 %v60
    %v279 = vunpack.c.l.b16 %v61
    %v280 = vunpack.c.l.b16 %v62
    %v281 = vunpack.c.l.b16 %v63
    %v282 = vunpack.c.l.b16 %v64
    %v283 = vunpack.c.l.b16 %v65
    %v284 = vunpack.c.l.b16 %v66
    %v285 = vunpack.c.l.b16 %v67
    %v286 = vunpack.c.l.b16 %v68
    %v287 = vunpack.c.l.b16 %v69
    %v288 = vpack.c.b16 %v273, %v272
    %v289 = vpack.c.b16 %v275, %v274
    %v290 = vpack.c.b16 %v277, %v276
    %v291 = vpack.c.b16 %v279, %v278
    %v292 = vpack.c.b16 %v281, %v280
    %v293 = vpack.c.b16 %v283, %v282
    %v294 = vpack.c.b16 %v285, %v284
    %v295 = vpack.c.b16 %v287, %v286
    %304 = vmatprep.subr.bf16.mxu0 0
    %305 = vmatpush1.bf16.msra.mxu0 %v295
    %306 = vmatprep.subr.bf16.mxu0 0
    %307 = vmatpush1.bf16.msra.mxu0 %v294
    %308 = vmatprep.subr.bf16.mxu0 0
    %309 = vmatpush1.bf16.msra.mxu0 %v293
    %310 = vmatprep.subr.bf16.mxu0 0
    %311 = vmatpush1.bf16.msra.mxu0 %v292
    %312 = vmatprep.subr.bf16.mxu0 0
    %313 = vmatpush1.bf16.msra.mxu0 %v291
    %314 = vmatprep.subr.bf16.mxu0 0
    %315 = vmatpush1.bf16.msra.mxu0 %v290
    %316 = vmatprep.subr.bf16.mxu0 0
    %317 = vmatpush1.bf16.msra.mxu0 %v289
    %318 = vmatprep.subr.bf16.mxu0 0
    %319 = vmatpush1.bf16.msra.mxu0 %v288
    %320 = vmatprep.subr.bf16.mxu0 0
    %321 = vmatpush2.bf16.msra.mxu0 0
    %322 = vmatprep.subr.bf16.mxu0 0
    %323 = vmatpush2.bf16.msra.mxu0 0
    %324 = vmatprep.subr.bf16.mxu0 0
    %325 = vmatpush2.bf16.msra.mxu0 0
    %326 = vmatprep.subr.bf16.mxu0 0
    %327 = vmatpush2.bf16.msra.mxu0 0
    %328 = vmatprep.subr.bf16.mxu0 0
    %329 = vmatpush2.bf16.msra.mxu0 0
    %330 = vmatprep.subr.bf16.mxu0 0
    %331 = vmatpush2.bf16.msra.mxu0 0
    %332 = vmatprep.subr.bf16.mxu0 0
    %333 = vmatpush2.bf16.msra.mxu0 0
    %334 = vmatprep.subr.bf16.mxu0 0
    %335 = vmatpush2.bf16.msra.mxu0 0
    %336 = vmatprep.mubr.bf16.mxu0 0
    %337 = vmatmul.mubr.bf16.gmra.mxu0 %v252
    %v338 = vpop.f32.mrf.mxu0
    %v339 = vadd.f32 %v230, %v338
    %v340 = vpop.f32.mrf.mxu0
    %v341 = vpop.f32.mrf.mxu0
    %v342 = vadd.f32 %v233, %v341
    %v343 = vpop.f32.mrf.mxu0
    %344 = vmatprep.mubr.bf16.mxu0 0
    %345 = vmatmul.mubr.bf16.gmra.mxu0 %v253
    %v346 = vpop.f32.mrf.mxu0
    %v347 = vadd.f32 %v238, %v346
    %v348 = vpop.f32.mrf.mxu0
    %v349 = vpop.f32.mrf.mxu0
    %v350 = vadd.f32 %v241, %v349
    %v351 = vpop.f32.mrf.mxu0
    %352 = vdwg.mxu0
    %v353 = vld [vmem:[%s0] sm:$0xe]
    %v354 = vld [vmem:[%s0 + $0xc] sm:$0xe]
    %vm359 = vcmask 1042432
    %vm360 = vcmask 1046532
    %vm361 = vmor %vm359, %vm360
    %v362 = vrot.slane %v353, 5
    %v363 = vrot.slane %v362, 4
    %v364 = vrot.slane %v51, 5
    %v365 = vsel %vm361, %v363, %v364
    %v366 = vrot.slane %v364, 4
    %v367 = vrot.slane %v70, 5
    %v368 = vsel %vm361, %v366, %v367
    %v369 = vrot.slane %v354, 5
    %v370 = vrot.slane %v369, 4
    %v371 = vrot.slane %v53, 5
    %v372 = vsel %vm361, %v370, %v371
    %v373 = vrot.slane %v371, 4
    %v374 = vrot.slane %v71, 5
    %v375 = vsel %vm361, %v373, %v374
    %v376 = vld [vmem:[#allocation2 + $0x80] sm:$0xf]
    %v377 = vld [vmem:[#allocation2 + $0x84] sm:$0xf]
    %v378 = vld [vmem:[#allocation2 + $0x88] sm:$0xf]
    %v379 = vld [vmem:[#allocation2 + $0x8c] sm:$0xf]
    %v380 = vld [vmem:[#allocation2 + $0x90] sm:$0xf]
    %v381 = vld [vmem:[#allocation2 + $0x94] sm:$0xf]
    %v382 = vld [vmem:[#allocation2 + $0x98] sm:$0xf]
    %v383 = vld [vmem:[#allocation2 + $0x9c] sm:$0xf]
    %v384 = vld [vmem:[#allocation2 + $0xa0] sm:$0xf]
    %v385 = vld [vmem:[#allocation2 + $0xa4] sm:$0xf]
    %v386 = vld [vmem:[#allocation2 + $0xa8] sm:$0xf]
    %v387 = vld [vmem:[#allocation2 + $0xac] sm:$0xf]
    %v388 = vld [vmem:[#allocation2 + $0xb0] sm:$0xf]
    %v389 = vld [vmem:[#allocation2 + $0xb4] sm:$0xf]
    %v390 = vld [vmem:[#allocation2 + $0xb8] sm:$0xf]
    %v391 = vld [vmem:[#allocation2 + $0xbc] sm:$0xf]
    %v392 = vunpack.c.l.b16 %v365
    %v393 = vunpack.c.l.b16 %v368
    %v394 = vunpack.c.l.b16 %v372
    %v395 = vunpack.c.l.b16 %v375
    %v396 = vpack.c.b16 %v393, %v392
    %v397 = vpack.c.b16 %v395, %v394
    %v416 = vunpack.c.l.b16 %v376
    %v417 = vunpack.c.l.b16 %v377
    %v418 = vunpack.c.l.b16 %v378
    %v419 = vunpack.c.l.b16 %v379
    %v420 = vunpack.c.l.b16 %v380
    %v421 = vunpack.c.l.b16 %v381
    %v422 = vunpack.c.l.b16 %v382
    %v423 = vunpack.c.l.b16 %v383
    %v424 = vunpack.c.l.b16 %v384
    %v425 = vunpack.c.l.b16 %v385
    %v426 = vunpack.c.l.b16 %v386
    %v427 = vunpack.c.l.b16 %v387
    %v428 = vunpack.c.l.b16 %v388
    %v429 = vunpack.c.l.b16 %v389
    %v430 = vunpack.c.l.b16 %v390
    %v431 = vunpack.c.l.b16 %v391
    %v432 = vpack.c.b16 %v417, %v416
    %v433 = vpack.c.b16 %v419, %v418
    %v434 = vpack.c.b16 %v421, %v420
    %v435 = vpack.c.b16 %v423, %v422
    %v436 = vpack.c.b16 %v425, %v424
    %v437 = vpack.c.b16 %v427, %v426
    %v438 = vpack.c.b16 %v429, %v428
    %v439 = vpack.c.b16 %v431, %v430
    %448 = vmatprep.subr.bf16.mxu0 0
    %449 = vmatpush1.bf16.msra.mxu0 %v439
    %450 = vmatprep.subr.bf16.mxu0 0
    %451 = vmatpush1.bf16.msra.mxu0 %v438
    %452 = vmatprep.subr.bf16.mxu0 0
    %453 = vmatpush1.bf16.msra.mxu0 %v437
    %454 = vmatprep.subr.bf16.mxu0 0
    %455 = vmatpush1.bf16.msra.mxu0 %v436
    %456 = vmatprep.subr.bf16.mxu0 0
    %457 = vmatpush1.bf16.msra.mxu0 %v435
    %458 = vmatprep.subr.bf16.mxu0 0
    %459 = vmatpush1.bf16.msra.mxu0 %v434
    %460 = vmatprep.subr.bf16.mxu0 0
    %461 = vmatpush1.bf16.msra.mxu0 %v433
    %462 = vmatprep.subr.bf16.mxu0 0
    %463 = vmatpush1.bf16.msra.mxu0 %v432
    %464 = vmatprep.subr.bf16.mxu0 0
    %465 = vmatpush2.bf16.msra.mxu0 0
    %466 = vmatprep.subr.bf16.mxu0 0
    %467 = vmatpush2.bf16.msra.mxu0 0
    %468 = vmatprep.subr.bf16.mxu0 0
    %469 = vmatpush2.bf16.msra.mxu0 0
    %470 = vmatprep.subr.bf16.mxu0 0
    %471 = vmatpush2.bf16.msra.mxu0 0
    %472 = vmatprep.subr.bf16.mxu0 0
    %473 = vmatpush2.bf16.msra.mxu0 0
    %474 = vmatprep.subr.bf16.mxu0 0
    %475 = vmatpush2.bf16.msra.mxu0 0
    %476 = vmatprep.subr.bf16.mxu0 0
    %477 = vmatpush2.bf16.msra.mxu0 0
    %478 = vmatprep.subr.bf16.mxu0 0
    %479 = vmatpush2.bf16.msra.mxu0 0
    %480 = vmatprep.mubr.bf16.mxu0 0
    %481 = vmatmul.mubr.bf16.gmra.mxu0 %v396
    %v482 = vpop.f32.mrf.mxu0
    %v483 = vadd.f32 0.0, %v482
    %v484 = vpop.f32.mrf.mxu0
    %v485 = vpop.f32.mrf.mxu0
    %v486 = vadd.f32 0.0, %v485
    %v487 = vpop.f32.mrf.mxu0
    %488 = vmatprep.mubr.bf16.mxu0 0
    %489 = vmatmul.mubr.bf16.gmra.mxu0 %v397
    %v490 = vpop.f32.mrf.mxu0
    %v491 = vadd.f32 0.0, %v490
    %v492 = vpop.f32.mrf.mxu0
    %v493 = vpop.f32.mrf.mxu0
    %v494 = vadd.f32 0.0, %v493
    %v495 = vpop.f32.mrf.mxu0
    %496 = vdwg.mxu0
    %v497 = vadd.f32 %v339, %v483
    %v498 = vadd.f32 %v342, %v486
    %v499 = vadd.f32 %v347, %v491
    %v500 = vadd.f32 %v350, %v494
    %v501 = vld [vmem:[%s0 + $0x8] sm:$0x3]
    %v502 = vld [vmem:[%s0 + $0x14] sm:$0x3]
    %vm503 = vsmask.f32 2304
    %vm504 = vsmask.f32 6416
    %vm505 = vmor %vm503, %vm504
    %v507 = vshrl.u32 %v353, 16
    %v509 = vrot.slane %v507, 5
    %v510 = vshll.u32 %v353, 16
    %v512 = vrot.slane %v510, 6
    %v513 = vor.u32 %v509, %v512
    %v514 = vrot.slane %v513, 4
    %v515 = vrot.slane %v89, 5
    %v516 = vrot.slane %v85, 6
    %v517 = vor.u32 %v515, %v516
    %v518 = vsel %vm505, %v514, %v517
    %v519 = vrot.slane %v517, 4
    %v521 = vshrl.u32 %v501, 16
    %v523 = vrot.slane %v521, 5
    %v524 = vshll.u32 %v501, 16
    %v526 = vrot.slane %v524, 6
    %v527 = vor.u32 %v523, %v526
    %v528 = vsel %vm505, %v519, %v527
    %v530 = vshrl.u32 %v354, 16
    %v532 = vrot.slane %v530, 5
    %v533 = vshll.u32 %v354, 16
    %v535 = vrot.slane %v533, 6
    %v536 = vor.u32 %v532, %v535
    %v537 = vrot.slane %v536, 4
    %v538 = vrot.slane %v113, 5
    %v539 = vrot.slane %v109, 6
    %v540 = vor.u32 %v538, %v539
    %v541 = vsel %vm505, %v537, %v540
    %v542 = vrot.slane %v540, 4
    %v544 = vshrl.u32 %v502, 16
    %v546 = vrot.slane %v544, 5
    %v547 = vshll.u32 %v502, 16
    %v549 = vrot.slane %v547, 6
    %v550 = vor.u32 %v546, %v549
    %v551 = vsel %vm505, %v542, %v550
    %v552 = vld [vmem:[#allocation2 + $0xc0] sm:$0xf]
    %v553 = vld [vmem:[#allocation2 + $0xc4] sm:$0xf]
    %v554 = vld [vmem:[#allocation2 + $0xc8] sm:$0xf]
    %v555 = vld [vmem:[#allocation2 + $0xcc] sm:$0xf]
    %v556 = vld [vmem:[#allocation2 + $0xd0] sm:$0xf]
    %v557 = vld [vmem:[#allocation2 + $0xd4] sm:$0xf]
    %v558 = vld [vmem:[#allocation2 + $0xd8] sm:$0xf]
    %v559 = vld [vmem:[#allocation2 + $0xdc] sm:$0xf]
    %v560 = vld [vmem:[#allocation2 + $0xe0] sm:$0xf]
    %v561 = vld [vmem:[#allocation2 + $0xe4] sm:$0xf]
    %v562 = vld [vmem:[#allocation2 + $0xe8] sm:$0xf]
    %v563 = vld [vmem:[#allocation2 + $0xec] sm:$0xf]
    %v564 = vld [vmem:[#allocation2 + $0xf0] sm:$0xf]
    %v565 = vld [vmem:[#allocation2 + $0xf4] sm:$0xf]
    %v566 = vld [vmem:[#allocation2 + $0xf8] sm:$0xf]
    %v567 = vld [vmem:[#allocation2 + $0xfc] sm:$0xf]
    %v568 = vunpack.c.l.b16 %v518
    %v569 = vunpack.c.l.b16 %v528
    %v570 = vunpack.c.l.b16 %v541
    %v571 = vunpack.c.l.b16 %v551
    %v572 = vpack.c.b16 %v569, %v568
    %v573 = vpack.c.b16 %v571, %v570
    %v592 = vunpack.c.l.b16 %v552
    %v593 = vunpack.c.l.b16 %v553
    %v594 = vunpack.c.l.b16 %v554
    %v595 = vunpack.c.l.b16 %v555
    %v596 = vunpack.c.l.b16 %v556
    %v597 = vunpack.c.l.b16 %v557
    %v598 = vunpack.c.l.b16 %v558
    %v599 = vunpack.c.l.b16 %v559
    %v600 = vunpack.c.l.b16 %v560
    %v601 = vunpack.c.l.b16 %v561
    %v602 = vunpack.c.l.b16 %v562
    %v603 = vunpack.c.l.b16 %v563
    %v604 = vunpack.c.l.b16 %v564
    %v605 = vunpack.c.l.b16 %v565
    %v606 = vunpack.c.l.b16 %v566
    %v607 = vunpack.c.l.b16 %v567
    %v608 = vpack.c.b16 %v593, %v592
    %v609 = vpack.c.b16 %v595, %v594
    %v610 = vpack.c.b16 %v597, %v596
    %v611 = vpack.c.b16 %v599, %v598
    %v612 = vpack.c.b16 %v601, %v600
    %v613 = vpack.c.b16 %v603, %v602
    %v614 = vpack.c.b16 %v605, %v604
    %v615 = vpack.c.b16 %v607, %v606
    %624 = vmatprep.subr.bf16.mxu0 0
    %625 = vmatpush1.bf16.msra.mxu0 %v615
    %626 = vmatprep.subr.bf16.mxu0 0
    %627 = vmatpush1.bf16.msra.mxu0 %v614
    %628 = vmatprep.subr.bf16.mxu0 0
    %629 = vmatpush1.bf16.msra.mxu0 %v613
    %630 = vmatprep.subr.bf16.mxu0 0
    %631 = vmatpush1.bf16.msra.mxu0 %v612
    %632 = vmatprep.subr.bf16.mxu0 0
    %633 = vmatpush1.bf16.msra.mxu0 %v611
    %634 = vmatprep.subr.bf16.mxu0 0
    %635 = vmatpush1.bf16.msra.mxu0 %v610
    %636 = vmatprep.subr.bf16.mxu0 0
    %637 = vmatpush1.bf16.msra.mxu0 %v609
    %638 = vmatprep.subr.bf16.mxu0 0
    %639 = vmatpush1.bf16.msra.mxu0 %v608
    %640 = vmatprep.subr.bf16.mxu0 0
    %641 = vmatpush2.bf16.msra.mxu0 0
    %642 = vmatprep.subr.bf16.mxu0 0
    %643 = vmatpush2.bf16.msra.mxu0 0
    %644 = vmatprep.subr.bf16.mxu0 0
    %645 = vmatpush2.bf16.msra.mxu0 0
    %646 = vmatprep.subr.bf16.mxu0 0
    %647 = vmatpush2.bf16.msra.mxu0 0
    %648 = vmatprep.subr.bf16.mxu0 0
    %649 = vmatpush2.bf16.msra.mxu0 0
    %650 = vmatprep.subr.bf16.mxu0 0
    %651 = vmatpush2.bf16.msra.mxu0 0
    %652 = vmatprep.subr.bf16.mxu0 0
    %653 = vmatpush2.bf16.msra.mxu0 0
    %654 = vmatprep.subr.bf16.mxu0 0
    %655 = vmatpush2.bf16.msra.mxu0 0
    %656 = vmatprep.mubr.bf16.mxu0 0
    %657 = vmatmul.mubr.bf16.gmra.mxu0 %v572
    %v658 = vpop.f32.mrf.mxu0
    %v659 = vadd.f32 0.0, %v658
    %v660 = vpop.f32.mrf.mxu0
    %v661 = vpop.f32.mrf.mxu0
    %v662 = vadd.f32 0.0, %v661
    %v663 = vpop.f32.mrf.mxu0
    %664 = vmatprep.mubr.bf16.mxu0 0
    %665 = vmatmul.mubr.bf16.gmra.mxu0 %v573
    %v666 = vpop.f32.mrf.mxu0
    %v667 = vadd.f32 0.0, %v666
    %v668 = vpop.f32.mrf.mxu0
    %v669 = vpop.f32.mrf.mxu0
    %v670 = vadd.f32 0.0, %v669
    %v671 = vpop.f32.mrf.mxu0
    %672 = vdwg.mxu0
    %v673 = vadd.f32 %v497, %v659
    %v674 = vadd.f32 %v498, %v662
    %v675 = vadd.f32 %v499, %v667
    %v676 = vadd.f32 %v500, %v670
    %v677 = vld [vmem:[%s0] sm:$0xc]
    %v678 = vld [vmem:[%s0 + $0xc] sm:$0xc]
    %vm683 = vcmask 1041408
    %vm684 = vcmask 1045508
    %vm685 = vmor %vm683, %vm684
    %v686 = vrot.slane %v677, 6
    %v687 = vrot.slane %v686, 4
    %v688 = vrot.slane %v51, 6
    %v689 = vsel %vm685, %v687, %v688
    %v690 = vrot.slane %v688, 4
    %v691 = vrot.slane %v501, 6
    %v692 = vsel %vm685, %v690, %v691
    %v693 = vrot.slane %v678, 6
    %v694 = vrot.slane %v693, 4
    %v695 = vrot.slane %v53, 6
    %v696 = vsel %vm685, %v694, %v695
    %v697 = vrot.slane %v695, 4
    %v698 = vrot.slane %v502, 6
    %v699 = vsel %vm685, %v697, %v698
    %v700 = vld [vmem:[#allocation2 + $0x100] sm:$0xf]
    %v701 = vld [vmem:[#allocation2 + $0x104] sm:$0xf]
    %v702 = vld [vmem:[#allocation2 + $0x108] sm:$0xf]
    %v703 = vld [vmem:[#allocation2 + $0x10c] sm:$0xf]
    %v704 = vld [vmem:[#allocation2 + $0x110] sm:$0xf]
    %v705 = vld [vmem:[#allocation2 + $0x114] sm:$0xf]
    %v706 = vld [vmem:[#allocation2 + $0x118] sm:$0xf]
    %v707 = vld [vmem:[#allocation2 + $0x11c] sm:$0xf]
    %v708 = vld [vmem:[#allocation2 + $0x120] sm:$0xf]
    %v709 = vld [vmem:[#allocation2 + $0x124] sm:$0xf]
    %v710 = vld [vmem:[#allocation2 + $0x128] sm:$0xf]
    %v711 = vld [vmem:[#allocation2 + $0x12c] sm:$0xf]
    %v712 = vld [vmem:[#allocation2 + $0x130] sm:$0xf]
    %v713 = vld [vmem:[#allocation2 + $0x134] sm:$0xf]
    %v714 = vld [vmem:[#allocation2 + $0x138] sm:$0xf]
    %v715 = vld [vmem:[#allocation2 + $0x13c] sm:$0xf]
    %v716 = vunpack.c.l.b16 %v689
    %v717 = vunpack.c.l.b16 %v692
    %v718 = vunpack.c.l.b16 %v696
    %v719 = vunpack.c.l.b16 %v699
    %v720 = vpack.c.b16 %v717, %v716
    %v721 = vpack.c.b16 %v719, %v718
    %v740 = vunpack.c.l.b16 %v700
    %v741 = vunpack.c.l.b16 %v701
    %v742 = vunpack.c.l.b16 %v702
    %v743 = vunpack.c.l.b16 %v703
    %v744 = vunpack.c.l.b16 %v704
    %v745 = vunpack.c.l.b16 %v705
    %v746 = vunpack.c.l.b16 %v706
    %v747 = vunpack.c.l.b16 %v707
    %v748 = vunpack.c.l.b16 %v708
    %v749 = vunpack.c.l.b16 %v709
    %v750 = vunpack.c.l.b16 %v710
    %v751 = vunpack.c.l.b16 %v711
    %v752 = vunpack.c.l.b16 %v712
    %v753 = vunpack.c.l.b16 %v713
    %v754 = vunpack.c.l.b16 %v714
    %v755 = vunpack.c.l.b16 %v715
    %v756 = vpack.c.b16 %v741, %v740
    %v757 = vpack.c.b16 %v743, %v742
    %v758 = vpack.c.b16 %v745, %v744
    %v759 = vpack.c.b16 %v747, %v746
    %v760 = vpack.c.b16 %v749, %v748
    %v761 = vpack.c.b16 %v751, %v750
    %v762 = vpack.c.b16 %v753, %v752
    %v763 = vpack.c.b16 %v755, %v754
    %772 = vmatprep.subr.bf16.mxu0 0
    %773 = vmatpush1.bf16.msra.mxu0 %v763
    %774 = vmatprep.subr.bf16.mxu0 0
    %775 = vmatpush1.bf16.msra.mxu0 %v762
    %776 = vmatprep.subr.bf16.mxu0 0
    %777 = vmatpush1.bf16.msra.mxu0 %v761
    %778 = vmatprep.subr.bf16.mxu0 0
    %779 = vmatpush1.bf16.msra.mxu0 %v760
    %780 = vmatprep.subr.bf16.mxu0 0
    %781 = vmatpush1.bf16.msra.mxu0 %v759
    %782 = vmatprep.subr.bf16.mxu0 0
    %783 = vmatpush1.bf16.msra.mxu0 %v758
    %784 = vmatprep.subr.bf16.mxu0 0
    %785 = vmatpush1.bf16.msra.mxu0 %v757
    %786 = vmatprep.subr.bf16.mxu0 0
    %787 = vmatpush1.bf16.msra.mxu0 %v756
    %788 = vmatprep.subr.bf16.mxu0 0
    %789 = vmatpush2.bf16.msra.mxu0 0
    %790 = vmatprep.subr.bf16.mxu0 0
    %791 = vmatpush2.bf16.msra.mxu0 0
    %792 = vmatprep.subr.bf16.mxu0 0
    %793 = vmatpush2.bf16.msra.mxu0 0
    %794 = vmatprep.subr.bf16.mxu0 0
    %795 = vmatpush2.bf16.msra.mxu0 0
    %796 = vmatprep.subr.bf16.mxu0 0
    %797 = vmatpush2.bf16.msra.mxu0 0
    %798 = vmatprep.subr.bf16.mxu0 0
    %799 = vmatpush2.bf16.msra.mxu0 0
    %800 = vmatprep.subr.bf16.mxu0 0
    %801 = vmatpush2.bf16.msra.mxu0 0
    %802 = vmatprep.subr.bf16.mxu0 0
    %803 = vmatpush2.bf16.msra.mxu0 0
    %804 = vmatprep.mubr.bf16.mxu0 0
    %805 = vmatmul.mubr.bf16.gmra.mxu0 %v720
    %v806 = vpop.f32.mrf.mxu0
    %v807 = vadd.f32 0.0, %v806
    %v808 = vpop.f32.mrf.mxu0
    %v809 = vpop.f32.mrf.mxu0
    %v810 = vadd.f32 0.0, %v809
    %v811 = vpop.f32.mrf.mxu0
    %812 = vmatprep.mubr.bf16.mxu0 0
    %813 = vmatmul.mubr.bf16.gmra.mxu0 %v721
    %v814 = vpop.f32.mrf.mxu0
    %v815 = vadd.f32 0.0, %v814
    %v816 = vpop.f32.mrf.mxu0
    %v817 = vpop.f32.mrf.mxu0
    %v818 = vadd.f32 0.0, %v817
    %v819 = vpop.f32.mrf.mxu0
    %820 = vdwg.mxu0
    %v821 = vadd.f32 %v673, %v807
    %v822 = vadd.f32 %v674, %v810
    %v823 = vadd.f32 %v675, %v815
    %v824 = vadd.f32 %v676, %v818
    %v825 = vld [vmem:[%s3] sm:$0x1]
    %v826 = vlaneseq
    %v827 = vshrl.u32 %v826, 7
    %v828 = vsub.s32 0, %v827
    %v829 = vrot.slane %v825, %v828
    %v830 = vadd.f32 %v821, %v829
    %v831 = vadd.f32 %v822, %v829
    %v832 = vadd.f32 %v823, %v829
    %v833 = vadd.f32 %v824, %v829
    %v834 = vmax.f32 %v830, 0.0
    %v835 = vmax.f32 %v831, 0.0
    %v836 = vmax.f32 %v832, 0.0
    %v837 = vmax.f32 %v833, 0.0
    %v838 = vld [vmem:[%s3 + $0x8] sm:$0xff]
    %v839 = vld [vmem:[%s3 + $0x10] sm:$0xff]
    %v840 = vmul.f32 %v834, %v838
    %v841 = vmul.f32 %v835, %v839
    %v842 = vmul.f32 %v836, %v838
    %v843 = vmul.f32 %v837, %v839
    %v844 = vmax.f32 %v840, %v841
    %v845 = vrot.slane %v844, 4
    %v846 = vmax.f32 %v844, %v845
    %v847 = vrot.slane %v846, 2
    %v848 = vmax.f32 %v846, %v847
    %v849 = vrot.slane %v848, 1
    %v850 = vmax.f32 %v848, %v849
    %v851 = vmax.f32 %v842, %v843
    %v852 = vrot.slane %v851, 4
    %v853 = vmax.f32 %v851, %v852
    %v854 = vrot.slane %v853, 2
    %v855 = vmax.f32 %v853, %v854
    %v856 = vrot.slane %v855, 1
    %v857 = vmax.f32 %v855, %v856
    %v858 = vld [vmem:[#allocation5] sm:$0xff]
    %v859 = vld [vmem:[#allocation5 + $0x8] sm:$0xff]
    %v860 = vld [vmem:[#allocation5 + $0x10] sm:$0xff]
    %v861 = vld [vmem:[#allocation5 + $0x18] sm:$0xff]
    %v862 = vld [vmem:[#allocation5 + $0x20] sm:$0xff]
    %v863 = vld [vmem:[#allocation5 + $0x28] sm:$0xff]
    %v864 = vld [vmem:[#allocation5 + $0x30] sm:$0xff]
    %v865 = vld [vmem:[#allocation5 + $0x38] sm:$0xff]
    %v866 = vld [vmem:[#allocation5 + $0x40] sm:$0xff]
    %v867 = vld [vmem:[#allocation5 + $0x48] sm:$0xff]
    %v868 = vld [vmem:[#allocation5 + $0x50] sm:$0xff]
    %v869 = vld [vmem:[#allocation5 + $0x58] sm:$0xff]
    %v870 = vld [vmem:[#allocation5 + $0x60] sm:$0xff]
    %v871 = vld [vmem:[#allocation5 + $0x68] sm:$0xff]
    %v872 = vld [vmem:[#allocation5 + $0x70] sm:$0xff]
    %v873 = vld [vmem:[#allocation5 + $0x78] sm:$0xff]
    %v874 = vld [vmem:[#allocation5 + $0x80] sm:$0xff]
    %v875 = vld [vmem:[%s1] sm:$0x3]
    %vm876 = vcmask 64512
    %v878 = vsel %vm876, %v875, 0
    %880 = vmatprep.subr.mxu0 0.0
    %881 = vmatpush1.msra.mxu0 0.0
    %882 = vmatprep.subr.mxu0 0.0
    %883 = vmatpush1.msra.mxu0 0.0
    %884 = vmatprep.subr.mxu0 0.0
    %885 = vmatpush1.msra.mxu0 0.0
    %886 = vmatprep.subr.mxu0 0.0
    %887 = vmatpush1.msra.mxu0 0.0
    %888 = vmatprep.subr.mxu0 0.0
    %889 = vmatpush1.msra.mxu0 0.0
    %890 = vmatprep.subr.mxu0 0.0
    %891 = vmatpush1.msra.mxu0 0.0
    %892 = vmatprep.subr.mxu0 0.0
    %893 = vmatpush1.msra.mxu0 0.0
    %894 = vmatprep.subr.mxu0 0.0
    %895 = vmatpush1.msra.mxu0 0.0
    %896 = vmatprep.subr.mxu0 0.0
    %897 = vmatpush1.msra.mxu0 0.0
    %898 = vmatprep.subr.mxu0 0.0
    %899 = vmatpush1.msra.mxu0 0.0
    %900 = vmatprep.subr.mxu0 0.0
    %901 = vmatpush1.msra.mxu0 0.0
    %902 = vmatprep.subr.mxu0 0.0
    %903 = vmatpush1.msra.mxu0 0.0
    %904 = vmatprep.subr.mxu0 0.0
    %905 = vmatpush1.msra.mxu0 0.0
    %906 = vmatprep.subr.mxu0 0.0
    %907 = vmatpush1.msra.mxu0 0.0
    %908 = vmatprep.subr.mxu0 0.0
    %909 = vmatpush1.msra.mxu0 0.0
    %910 = vmatprep.subr.mxu0 0.0
    %911 = vmatpush1.msra.mxu0 %v874
    %912 = vmatprep.subr.mxu0 0.0
    %913 = vmatpush2.msra.mxu0 0.0
    %914 = vmatprep.subr.mxu0 0.0
    %915 = vmatpush2.msra.mxu0 0.0
    %916 = vmatprep.subr.mxu0 0.0
    %917 = vmatpush2.msra.mxu0 0.0
    %918 = vmatprep.subr.mxu0 0.0
    %919 = vmatpush2.msra.mxu0 0.0
    %920 = vmatprep.subr.mxu0 0.0
    %921 = vmatpush2.msra.mxu0 0.0
    %922 = vmatprep.subr.mxu0 0.0
    %923 = vmatpush2.msra.mxu0 0.0
    %924 = vmatprep.subr.mxu0 0.0
    %925 = vmatpush2.msra.mxu0 0.0
    %926 = vmatprep.subr.mxu0 0.0
    %927 = vmatpush2.msra.mxu0 0.0
    %928 = vmatprep.subr.mxu0 0.0
    %929 = vmatpush2.msra.mxu0 0.0
    %930 = vmatprep.subr.mxu0 0.0
    %931 = vmatpush2.msra.mxu0 0.0
    %932 = vmatprep.subr.mxu0 0.0
    %933 = vmatpush2.msra.mxu0 0.0
    %934 = vmatprep.subr.mxu0 0.0
    %935 = vmatpush2.msra.mxu0 0.0
    %936 = vmatprep.subr.mxu0 0.0
    %937 = vmatpush2.msra.mxu0 0.0
    %938 = vmatprep.subr.mxu0 0.0
    %939 = vmatpush2.msra.mxu0 0.0
    %940 = vmatprep.subr.mxu0 0.0
    %941 = vmatpush2.msra.mxu0 0.0
    %942 = vmatprep.subr.mxu0 0.0
    %943 = vmatpush2.msra.mxu0 0.0
    %944 = vmatprep.mubr.f32.mxu0 0.0
    %945 = vmatmul.mubr.f32.gmra.mxu0 %v878
    %v946 = vpop.f32.mrf.mxu0
    %v947 = vadd.f32 0.0, %v946
    %v948 = vpop.f32.mrf.mxu0
    %949 = vdwg.mxu0
    %vm952 = vcmask 1041409
    %v953 = vsel %vm952, %v857, %v850
    %955 = vmatprep.subr.mxu0 0.0
    %956 = vmatpush1.msra.mxu0 %v873
    %957 = vmatprep.subr.mxu0 0.0
    %958 = vmatpush1.msra.mxu0 %v872
    %959 = vmatprep.subr.mxu0 0.0
    %960 = vmatpush1.msra.mxu0 %v871
    %961 = vmatprep.subr.mxu0 0.0
    %962 = vmatpush1.msra.mxu0 %v870
    %963 = vmatprep.subr.mxu0 0.0
    %964 = vmatpush1.msra.mxu0 %v869
    %965 = vmatprep.subr.mxu0 0.0
    %966 = vmatpush1.msra.mxu0 %v868
    %967 = vmatprep.subr.mxu0 0.0
    %968 = vmatpush1.msra.mxu0 %v867
    %969 = vmatprep.subr.mxu0 0.0
    %970 = vmatpush1.msra.mxu0 %v866
    %971 = vmatprep.subr.mxu0 0.0
    %972 = vmatpush1.msra.mxu0 %v865
    %973 = vmatprep.subr.mxu0 0.0
    %974 = vmatpush1.msra.mxu0 %v864
    %975 = vmatprep.subr.mxu0 0.0
    %976 = vmatpush1.msra.mxu0 %v863
    %977 = vmatprep.subr.mxu0 0.0
    %978 = vmatpush1.msra.mxu0 %v862
    %979 = vmatprep.subr.mxu0 0.0
    %980 = vmatpush1.msra.mxu0 %v861
    %981 = vmatprep.subr.mxu0 0.0
    %982 = vmatpush1.msra.mxu0 %v860
    %983 = vmatprep.subr.mxu0 0.0
    %984 = vmatpush1.msra.mxu0 %v859
    %985 = vmatprep.subr.mxu0 0.0
    %986 = vmatpush1.msra.mxu0 %v858
    %987 = vmatprep.subr.mxu0 0.0
    %988 = vmatpush2.msra.mxu0 0.0
    %989 = vmatprep.subr.mxu0 0.0
    %990 = vmatpush2.msra.mxu0 0.0
    %991 = vmatprep.subr.mxu0 0.0
    %992 = vmatpush2.msra.mxu0 0.0
    %993 = vmatprep.subr.mxu0 0.0
    %994 = vmatpush2.msra.mxu0 0.0
    %995 = vmatprep.subr.mxu0 0.0
    %996 = vmatpush2.msra.mxu0 0.0
    %997 = vmatprep.subr.mxu0 0.0
    %998 = vmatpush2.msra.mxu0 0.0
    %999 = vmatprep.subr.mxu0 0.0
    %1000 = vmatpush2.msra.mxu0 0.0
    %1001 = vmatprep.subr.mxu0 0.0
    %1002 = vmatpush2.msra.mxu0 0.0
    %1003 = vmatprep.subr.mxu0 0.0
    %1004 = vmatpush2.msra.mxu0 0.0
    %1005 = vmatprep.subr.mxu0 0.0
    %1006 = vmatpush2.msra.mxu0 0.0
    %1007 = vmatprep.subr.mxu0 0.0
    %1008 = vmatpush2.msra.mxu0 0.0
    %1009 = vmatprep.subr.mxu0 0.0
    %1010 = vmatpush2.msra.mxu0 0.0
    %1011 = vmatprep.subr.mxu0 0.0
    %1012 = vmatpush2.msra.mxu0 0.0
    %1013 = vmatprep.subr.mxu0 0.0
    %1014 = vmatpush2.msra.mxu0 0.0
    %1015 = vmatprep.subr.mxu0 0.0
    %1016 = vmatpush2.msra.mxu0 0.0
    %1017 = vmatprep.subr.mxu0 0.0
    %1018 = vmatpush2.msra.mxu0 0.0
    %1019 = vmatprep.mubr.f32.mxu0 0.0
    %1020 = vmatmul.mubr.f32.gmra.mxu0 %v953
    %v1021 = vpop.f32.mrf.mxu0
    %v1022 = vadd.f32 %v947, %v1021
    %v1023 = vpop.f32.mrf.mxu0
    %1024 = vdwg.mxu0
    %1025 = vst [vmem:[#allocation7] sm:$0x3] %v1022
    // Predicated region
    $region30: #{tpu_custom_call.1} parent=1 // pred_check
      _
    $region31: #{tpu_custom_call.1} parent=1 // pred_check_branch
      %1027 = sbr.rel (0) target = $region33
    $region32: #{tpu_custom_call.1} parent=1 // pred_region
      %s1029 = ssub.s32 32, 32
      %1030 = vsyncadd [#allocation4], %s1029
      %s1032 = sshll.u32 [#allocation7], 4
      %s1033 = int_to_ptr.vmem [resolvable:$true] %s1032
      %1035 = dma.vmem_to_hbm [thread:$0]  %s1033, 32, %s5, [#allocation4]
    $region33: #{tpu_custom_call.1} parent=1 // pred_fallthru
      _
    // Predicated region
    $region34: #{tpu_custom_call.1} parent=1 // pred_check
      _
    $region35: #{tpu_custom_call.1} parent=1 // pred_check_branch
      %1037 = sbr.rel (0) target = $region37
    $region36: #{tpu_custom_call.1} parent=1 // pred_region
      %1038 = dma.done [#allocation4], 32
    $region37: #{tpu_custom_call.1} parent=1 // pred_fallthru
      _
    %1039 = vsyncpa [#allocation3], 1
    %1040 = vsyncpa [#allocation6], 1
    %1041 = vsyncpa [#allocation4], 1

</llo_original>
